<compile_context>
chip_gen: v6e
topology: v6e:2x2x1
jax: 0.10.0
libtpu: 0.0.40
codegen_flags: <defaults>
</compile_context>

<pallas_src>
import functools

import jax
import jax.numpy as jnp
from jax import lax
from jax.experimental import pallas as pl
from jax.experimental.pallas import tpu as pltpu


# ---------------- configuration (small, consistent with the module) ---------
FEATURE_TYPES = ["pause", "pause_raw", "word_dur", "pitch", "fbank"]
FEAT_SIZES = {"pitch": 3, "fbank": 3}     # frame features -> feat_dim = 6
CONV_SIZES = [2, 3]                       # scaled-down versions of [5,10,25,50]
NUM_CONV = 8
D_PAUSE_EMB = 4
PAUSE_VOCAB = 9
WORD_LENGTH = 16                          # fixed_word_length (scaled down)
D_OUT = 32

B, S = 2, 4                               # batch, sequence length
FEAT_DIM = sum(FEAT_SIZES.values())
D_CONV = NUM_CONV * len(CONV_SIZES)
D_IN = 2 * D_PAUSE_EMB + 2 + 2 + D_CONV   # pause embs + pause_raw + word_dur + conv


def _round8(x):
    return -(-x // 8) * 8


# ---------------------------- Pallas kernel ---------------------------------
def _encoder_kernel(bsz, seq, vocab, d_emb, conv_sizes, num_conv, feat_dim, wop,
                    xcol_offs, emb_off, cw_offs, cb_offs, wp_off, bp_off,
                    idx_ref, scalars_ref, xcol_ref, wslab_ref, out_ref):
    """Single grid step: processes all bsz*seq words.

    idx_ref     : (2n, 1) int32   -- pause_before rows then pause_after rows
    scalars_ref : (n, 4)  f32     -- [pause_raw (2) | word_dur (2)]
    xcol_ref    : (n*wop, sum_f f*feat_dim) f32 -- im2col slabs side by side
    wslab_ref   : (R, 128) f32    -- packed weights (see wrapper)
    out_ref     : (bsz, seq*d_out) f32
    Rows of every per-word matrix are s-major: row = s*bsz + b.
    """
    n = bsz * seq
    d_out = out_ref.shape[1] // seq
    d_in = 2 * d_emb + 4 + num_conv * len(conv_sizes)

    slab = wslab_ref[...]                                        # (R, 128)
    xcol = xcol_ref[...]                                         # (n*wop, sumK)

    # --- pause embeddings: both lookups as ONE one-hot matmul ---------------
    idx = idx_ref[...]                                           # (2n, 1) int32
    hot = (idx == lax.broadcasted_iota(jnp.int32, (2 * n, vocab), 1)
           ).astype(jnp.float32)                                 # (2n, vocab)
    emb_tbl = slab[emb_off:emb_off + vocab, 0:d_emb]             # (vocab, d_emb)
    embs = jnp.dot(hot, emb_tbl, preferred_element_type=jnp.float32)  # (2n, d_emb)

    # --- projection = sum of partial matmuls over static proj_w row blocks --
    wp = slab[wp_off:wp_off + d_in, 0:d_out]                     # (d_in, d_out)
    bp = slab[bp_off:bp_off + 1, 0:d_out]                        # (1, d_out)

    acc = jnp.dot(embs[:n], wp[0:d_emb], preferred_element_type=jnp.float32)
    acc = acc + jnp.dot(embs[n:], wp[d_emb:2 * d_emb],
                        preferred_element_type=jnp.float32)
    acc = acc + jnp.dot(scalars_ref[...], wp[2 * d_emb:2 * d_emb + 4],
                        preferred_element_type=jnp.float32)

    # --- Conv2d(1, C, (f, feat_dim)) + ReLU + MaxPool: one GEMM per size ----
    col = 2 * d_emb + 4
    for ci, f in enumerate(conv_sizes):
        kk = f * feat_dim
        xo = xcol_offs[ci]
        cw = slab[cw_offs[ci]:cw_offs[ci] + kk, 0:num_conv]      # (f*F, C)
        cb = slab[cb_offs[ci]:cb_offs[ci] + 1, 0:num_conv]       # (1, C)
        y = jnp.dot(xcol[:, xo:xo + kk], cw,
                    preferred_element_type=jnp.float32)          # (n*wop, C)
        y = jnp.maximum(y + cb, 0.0)                             # bias + ReLU
        # time axis padded by duplicated windows -> max over wop == true max
        y = jnp.max(y.reshape(n, wop, num_conv), axis=1)         # (n, C)
        acc = acc + jnp.dot(y, wp[col:col + num_conv],
                            preferred_element_type=jnp.float32)
        col += num_conv

    acc = acc + bp                                               # (n, d_out)

    # --- lane-dense (bsz, seq*d_out) store; speech_dropout(p=0) = identity --
    out_ref[...] = jnp.concatenate(
        [acc[si * bsz:(si + 1) * bsz, :] for si in range(seq)], axis=-1
    ).astype(out_ref.dtype)


# ------------------------------- wrapper -------------------------------------
def _pack_rows(pieces, width=128):
    """Pack 2-D pieces into one (rows, width) f32 slab.  Each piece starts at
    an 8-aligned row and occupies columns [0, piece.shape[1])."""
    offs, padded, r = [], [], 0
    for p in pieces:
        p = jnp.asarray(p, jnp.float32)
        rows = _round8(p.shape[0])
        offs.append(r)
        padded.append(jnp.pad(p, ((0, rows - p.shape[0]),
                                  (0, width - p.shape[1]))))
        r += rows
    return jnp.concatenate(padded, axis=0), offs


def speech_feature_encoder(pause_before, pause_after, rp, wd, frames, params):
    b, s = pause_before.shape
    w, fdim = frames.shape[2], frames.shape[3]
    n = b * s
    wop = _round8(w)                       # padded pool length (>= all w-f+1)

    emb = params["emb"]
    wp, bp = params["proj_w"], params["proj_b"]
    vocab, d_emb = emb.shape
    num_conv = params["conv_w"][0].shape[-1]
    d_out = wp.shape[1]

    # ---- word rows are s-major: row = s*b + batch ---------------------------
    pb = jnp.transpose(pause_before).reshape(n, 1)
    pa = jnp.transpose(pause_after).reshape(n, 1)
    idx = jnp.concatenate([pb, pa], axis=0).astype(jnp.int32)            # (2n,1)

    rp_t = jnp.transpose(rp, (2, 0, 1)).reshape(n, 2)        # rp.transpose(1,2)
    wd_t = jnp.transpose(wd, (2, 0, 1)).reshape(n, 2)        # wd.transpose(1,2)
    scalars = jnp.concatenate([rp_t, wd_t], axis=-1).astype(jnp.float32)

    # ---- im2col (layout plumbing): (n*wop, f*F) slab per conv size; the time
    #      axis is padded to wop by duplicating the last valid window so the
    #      in-kernel max over wop rows equals the max over the real windows.
    x = jnp.transpose(frames, (1, 0, 2, 3)).reshape(n, w, fdim)
    x = x.astype(jnp.float32)
    xcol_parts, xcol_offs, xo = [], [], 0
    for f in CONV_SIZES:
        wo = w - f + 1
        t_idx = jnp.minimum(jnp.arange(wop), wo - 1)
        windows = [x[:, t_idx + sh, :] for sh in range(f)]       # (n, wop, F)
        xcol_parts.append(
            jnp.concatenate(windows, axis=-1).reshape(n * wop, f * fdim))
        xcol_offs.append(xo)
        xo += f * fdim
    xcol = jnp.concatenate(xcol_parts, axis=-1)                  # (n*wop, sumK)

    # ---- one packed weight slab: emb | conv_w* | conv_b | proj_w | proj_b ---
    conv_w2d = [cw.reshape(f * fdim, num_conv)
                for f, cw in zip(CONV_SIZES, params["conv_w"])]
    conv_b2d = jnp.concatenate([cb.reshape(1, num_conv)
                                for cb in params["conv_b"]], axis=0)
    wslab, offs = _pack_rows([emb] + conv_w2d + [conv_b2d, wp, bp])
    emb_off = offs[0]
    cw_offs = tuple(offs[1:1 + len(CONV_SIZES)])
    cb_offs = tuple(offs[1 + len(CONV_SIZES)] + i for i in range(len(CONV_SIZES)))
    wp_off = offs[2 + len(CONV_SIZES)]
    bp_off = offs[3 + len(CONV_SIZES)]

    kernel = functools.partial(
        _encoder_kernel, b, s, vocab, d_emb, tuple(CONV_SIZES), num_conv,
        fdim, wop, tuple(xcol_offs), emb_off, cw_offs, cb_offs, wp_off, bp_off)

    out2d = pl.pallas_call(
        kernel,
        out_shape=jax.ShapeDtypeStruct((b, s * d_out), jnp.float32),
        grid=(1,),                                   # single step; see header
        in_specs=[
            pl.BlockSpec(idx.shape, lambda i: (0, 0)),
            pl.BlockSpec(scalars.shape, lambda i: (0, 0)),
            pl.BlockSpec(xcol.shape, lambda i: (0, 0)),
            pl.BlockSpec(wslab.shape, lambda i: (0, 0)),
        ],
        out_specs=pl.BlockSpec((b, s * d_out), lambda i: (0, 0)),
        compiler_params=pltpu.CompilerParams(
            dimension_semantics=("arbitrary",)),
    )(idx, scalars, xcol, wslab)

    return out2d.reshape(b, s, d_out)


# ---------------------- pure-JAX reference (for checking) -------------------
def reference(pause_before, pause_after, rp, wd, frames, params):
    emb = params["emb"]
    e_b = emb[pause_before]
    e_a = emb[pause_after]
    rp_t = jnp.transpose(rp, (0, 2, 1))
    wd_t = jnp.transpose(wd, (0, 2, 1))
    b, s, wlen, fdim = frames.shape
    x = frames.reshape(b * s, wlen, fdim)
    convs = []
    for f, cw, cb in zip(CONV_SIZES, params["conv_w"], params["conv_b"]):
        wo = wlen - f + 1
        out = jnp.zeros((b * s, wo, cw.shape[-1]), jnp.float32)
        for sh in range(f):
            out = out + jnp.einsum("nwd,dc->nwc", x[:, sh:sh + wo, :], cw[sh])
        out = jnp.maximum(out + cb[0], 0.0)
        convs.append(out.max(axis=1).reshape(b, s, -1))
    allf = jnp.concatenate([e_b, e_a, rp_t, wd_t] + convs, axis=-1)
    return allf @ params["proj_w"] + params["proj_b"][0]


if __name__ == "__main__":
    key = jax.random.PRNGKey(0)
    keys = jax.random.split(key, 16)
    pause_before = jax.random.randint(keys[0], (B, S), 0, PAUSE_VOCAB)
    pause_after = jax.random.randint(keys[1], (B, S), 0, PAUSE_VOCAB)
    rp = jax.random.normal(keys[2], (B, 2, S), jnp.float32)      # pause_raw
    wd = jax.random.normal(keys[3], (B, 2, S), jnp.float32)      # word_dur
    frames = jax.random.normal(keys[4], (B, S, WORD_LENGTH, FEAT_DIM),
                               jnp.float32)

    # deterministic synthetic parameters (shapes match the module __init__)
    params = {
        "emb": jax.random.normal(keys[5], (PAUSE_VOCAB, D_PAUSE_EMB),
                                 jnp.float32),
        # PyTorch Conv2d weight [C,1,f,F] stored permuted as [f, F, C]
        "conv_w": [0.1 * jax.random.normal(keys[6 + i],
                                           (f, FEAT_DIM, NUM_CONV), jnp.float32)
                   for i, f in enumerate(CONV_SIZES)],
        "conv_b": [0.1 * jax.random.normal(keys[9 + i], (1, NUM_CONV),
                                           jnp.float32)
                   for i in range(len(CONV_SIZES))],
        "proj_w": 0.1 * jax.random.normal(keys[12], (D_IN, D_OUT), jnp.float32),
        "proj_b": 0.1 * jax.random.normal(keys[13], (1, D_OUT), jnp.float32),
    }

    out = speech_feature_encoder(pause_before, pause_after, rp, wd, frames,
                                 params)
    out = jax.block_until_ready(out)
    assert out.shape == (B, S, D_OUT), out.shape

    ref = reference(pause_before, pause_after, rp, wd, frames, params)
    assert jnp.allclose(out, ref, atol=1e-3, rtol=1e-3), (
        float(jnp.max(jnp.abs(out - ref))))
    print("KERNEL_OK")
</pallas_src>

<mosaic_0001>
module attributes {stable_mosaic.version = 11 : i64} {
  func.func @_encoder_kernel(%arg0: i32, %arg1: memref<16x1xi32, #tpu.memory_space<vmem>>, %arg2: memref<8x4xf32, #tpu.memory_space<vmem>>, %arg3: memref<128x30xf32, #tpu.memory_space<vmem>>, %arg4: memref<104x128xf32, #tpu.memory_space<vmem>>, %arg5: memref<2x128xf32, #tpu.memory_space<vmem>>) attributes {dimension_semantics = [#tpu.dimension_semantics<arbitrary>], iteration_bounds = array<i64: 1>, scalar_prefetch = 0 : i64, scratch_operands = 0 : i64, tpu.core_type = #tpu.core_type<tc>, window_params = [{pipeline_mode = #tpu.pipeline_mode<synchronous>, transform_indices = @transform_0, window_bounds = array<i64: 16, 1>}, {pipeline_mode = #tpu.pipeline_mode<synchronous>, transform_indices = @transform_1, window_bounds = array<i64: 8, 4>}, {pipeline_mode = #tpu.pipeline_mode<synchronous>, transform_indices = @transform_2, window_bounds = array<i64: 128, 30>}, {pipeline_mode = #tpu.pipeline_mode<synchronous>, transform_indices = @transform_3, window_bounds = array<i64: 104, 128>}, {pipeline_mode = #tpu.pipeline_mode<synchronous>, transform_indices = @transform_4, window_bounds = array<i64: 2, 128>}]} {
    %c0 = arith.constant 0 : index
    %c0_0 = arith.constant 0 : index
    %0 = vector.load %arg4[%c0, %c0_0] : memref<104x128xf32, #tpu.memory_space<vmem>>, vector<104x128xf32>
    %c0_1 = arith.constant 0 : index
    %c0_2 = arith.constant 0 : index
    %1 = vector.load %arg3[%c0_1, %c0_2] : memref<128x30xf32, #tpu.memory_space<vmem>>, vector<128x30xf32>
    %c0_3 = arith.constant 0 : index
    %c0_4 = arith.constant 0 : index
    %2 = vector.load %arg1[%c0_3, %c0_4] : memref<16x1xi32, #tpu.memory_space<vmem>>, vector<16x1xi32>
    %3 = tpu.iota {dimensions = array<i32: 1>} : vector<16x9xi32>
    %4 = vector.broadcast %2 : vector<16x1xi32> to vector<16x9xi32>
    %5 = arith.cmpi eq, %4, %3 : vector<16x9xi32>
    %6 = arith.extui %5 : vector<16x9xi1> to vector<16x9xi32>
    %7 = arith.sitofp %6 : vector<16x9xi32> to vector<16x9xf32>
    %8 = vector.extract_strided_slice %0 {offsets = [0, 0], sizes = [9, 4], strides = [1, 1]} : vector<104x128xf32> to vector<9x4xf32>
    %cst = arith.constant dense<0.000000e+00> : vector<16x4xf32>
    %9 = tpu.matmul %7, %8, %cst {dimension_numbers = #tpu.dot_dimension_numbers<[1], [0], [0], [1], [0, 0, 1, 1], [], []>} : vector<16x9xf32>, vector<9x4xf32>, vector<16x4xf32> -> vector<16x4xf32>
    %10 = vector.extract_strided_slice %0 {offsets = [64, 0], sizes = [28, 32], strides = [1, 1]} : vector<104x128xf32> to vector<28x32xf32>
    %11 = vector.extract_strided_slice %0 {offsets = [96, 0], sizes = [1, 32], strides = [1, 1]} : vector<104x128xf32> to vector<1x32xf32>
    %12 = vector.extract_strided_slice %9 {offsets = [0, 0], sizes = [8, 4], strides = [1, 1]} : vector<16x4xf32> to vector<8x4xf32>
    %13 = vector.extract_strided_slice %10 {offsets = [0, 0], sizes = [4, 32], strides = [1, 1]} : vector<28x32xf32> to vector<4x32xf32>
    %cst_5 = arith.constant dense<0.000000e+00> : vector<8x32xf32>
    %14 = tpu.matmul %12, %13, %cst_5 {dimension_numbers = #tpu.dot_dimension_numbers<[1], [0], [0], [1], [0, 0, 1, 1], [], []>} : vector<8x4xf32>, vector<4x32xf32>, vector<8x32xf32> -> vector<8x32xf32>
    %15 = vector.extract_strided_slice %9 {offsets = [8, 0], sizes = [8, 4], strides = [1, 1]} : vector<16x4xf32> to vector<8x4xf32>
    %16 = vector.extract_strided_slice %10 {offsets = [4, 0], sizes = [4, 32], strides = [1, 1]} : vector<28x32xf32> to vector<4x32xf32>
    %cst_6 = arith.constant dense<0.000000e+00> : vector<8x32xf32>
    %17 = tpu.matmul %15, %16, %cst_6 {dimension_numbers = #tpu.dot_dimension_numbers<[1], [0], [0], [1], [0, 0, 1, 1], [], []>} : vector<8x4xf32>, vector<4x32xf32>, vector<8x32xf32> -> vector<8x32xf32>
    %18 = arith.addf %14, %17 : vector<8x32xf32>
    %c0_7 = arith.constant 0 : index
    %c0_8 = arith.constant 0 : index
    %19 = vector.load %arg2[%c0_7, %c0_8] : memref<8x4xf32, #tpu.memory_space<vmem>>, vector<8x4xf32>
    %20 = vector.extract_strided_slice %10 {offsets = [8, 0], sizes = [4, 32], strides = [1, 1]} : vector<28x32xf32> to vector<4x32xf32>
    %cst_9 = arith.constant dense<0.000000e+00> : vector<8x32xf32>
    %21 = tpu.matmul %19, %20, %cst_9 {dimension_numbers = #tpu.dot_dimension_numbers<[1], [0], [0], [1], [0, 0, 1, 1], [], []>} : vector<8x4xf32>, vector<4x32xf32>, vector<8x32xf32> -> vector<8x32xf32>
    %22 = arith.addf %18, %21 : vector<8x32xf32>
    %23 = vector.extract_strided_slice %0 {offsets = [16, 0], sizes = [12, 8], strides = [1, 1]} : vector<104x128xf32> to vector<12x8xf32>
    %24 = vector.extract_strided_slice %0 {offsets = [56, 0], sizes = [1, 8], strides = [1, 1]} : vector<104x128xf32> to vector<1x8xf32>
    %25 = vector.extract_strided_slice %1 {offsets = [0, 0], sizes = [128, 12], strides = [1, 1]} : vector<128x30xf32> to vector<128x12xf32>
    %cst_10 = arith.constant dense<0.000000e+00> : vector<128x8xf32>
    %26 = tpu.matmul %25, %23, %cst_10 {dimension_numbers = #tpu.dot_dimension_numbers<[1], [0], [0], [1], [0, 0, 1, 1], [], []>} : vector<128x12xf32>, vector<12x8xf32>, vector<128x8xf32> -> vector<128x8xf32>
    %27 = vector.broadcast %24 : vector<1x8xf32> to vector<128x8xf32>
    %28 = arith.addf %26, %27 : vector<128x8xf32>
    %cst_11 = arith.constant 0.000000e+00 : f32
    %29 = vector.broadcast %cst_11 : f32 to vector<128x8xf32>
    %30 = arith.maximumf %28, %29 : vector<128x8xf32>
    %31 = vector.shape_cast %30 : vector<128x8xf32> to vector<8x16x8xf32>
    %cst_12 = arith.constant dense<0xFF800000> : vector<8x8xf32>
    %32 = vector.multi_reduction <maximumf>, %31, %cst_12 [1] : vector<8x16x8xf32> to vector<8x8xf32>
    %33 = vector.extract_strided_slice %10 {offsets = [12, 0], sizes = [8, 32], strides = [1, 1]} : vector<28x32xf32> to vector<8x32xf32>
    %cst_13 = arith.constant dense<0.000000e+00> : vector<8x32xf32>
    %34 = tpu.matmul %32, %33, %cst_13 {dimension_numbers = #tpu.dot_dimension_numbers<[1], [0], [0], [1], [0, 0, 1, 1], [], []>} : vector<8x8xf32>, vector<8x32xf32>, vector<8x32xf32> -> vector<8x32xf32>
    %35 = arith.addf %22, %34 : vector<8x32xf32>
    %36 = vector.extract_strided_slice %0 {offsets = [32, 0], sizes = [18, 8], strides = [1, 1]} : vector<104x128xf32> to vector<18x8xf32>
    %37 = vector.extract_strided_slice %0 {offsets = [57, 0], sizes = [1, 8], strides = [1, 1]} : vector<104x128xf32> to vector<1x8xf32>
    %38 = vector.extract_strided_slice %1 {offsets = [0, 12], sizes = [128, 18], strides = [1, 1]} : vector<128x30xf32> to vector<128x18xf32>
    %cst_14 = arith.constant dense<0.000000e+00> : vector<128x8xf32>
    %39 = tpu.matmul %38, %36, %cst_14 {dimension_numbers = #tpu.dot_dimension_numbers<[1], [0], [0], [1], [0, 0, 1, 1], [], []>} : vector<128x18xf32>, vector<18x8xf32>, vector<128x8xf32> -> vector<128x8xf32>
    %40 = vector.broadcast %37 : vector<1x8xf32> to vector<128x8xf32>
    %41 = arith.addf %39, %40 : vector<128x8xf32>
    %cst_15 = arith.constant 0.000000e+00 : f32
    %42 = vector.broadcast %cst_15 : f32 to vector<128x8xf32>
    %43 = arith.maximumf %41, %42 : vector<128x8xf32>
    %44 = vector.shape_cast %43 : vector<128x8xf32> to vector<8x16x8xf32>
    %cst_16 = arith.constant dense<0xFF800000> : vector<8x8xf32>
    %45 = vector.multi_reduction <maximumf>, %44, %cst_16 [1] : vector<8x16x8xf32> to vector<8x8xf32>
    %46 = vector.extract_strided_slice %10 {offsets = [20, 0], sizes = [8, 32], strides = [1, 1]} : vector<28x32xf32> to vector<8x32xf32>
    %cst_17 = arith.constant dense<0.000000e+00> : vector<8x32xf32>
    %47 = tpu.matmul %45, %46, %cst_17 {dimension_numbers = #tpu.dot_dimension_numbers<[1], [0], [0], [1], [0, 0, 1, 1], [], []>} : vector<8x8xf32>, vector<8x32xf32>, vector<8x32xf32> -> vector<8x32xf32>
    %48 = arith.addf %35, %47 : vector<8x32xf32>
    %49 = vector.broadcast %11 : vector<1x32xf32> to vector<8x32xf32>
    %50 = arith.addf %48, %49 : vector<8x32xf32>
    %51 = vector.extract_strided_slice %50 {offsets = [0, 0], sizes = [2, 32], strides = [1, 1]} : vector<8x32xf32> to vector<2x32xf32>
    %52 = vector.extract_strided_slice %50 {offsets = [2, 0], sizes = [2, 32], strides = [1, 1]} : vector<8x32xf32> to vector<2x32xf32>
    %53 = vector.extract_strided_slice %50 {offsets = [4, 0], sizes = [2, 32], strides = [1, 1]} : vector<8x32xf32> to vector<2x32xf32>
    %54 = vector.extract_strided_slice %50 {offsets = [6, 0], sizes = [2, 32], strides = [1, 1]} : vector<8x32xf32> to vector<2x32xf32>
    %55 = tpu.concatenate %51, %52, %53, %54 in 1 : vector<2x32xf32>, vector<2x32xf32>, vector<2x32xf32>, vector<2x32xf32> -> vector<2x128xf32>
    %c0_18 = arith.constant 0 : index
    %c0_19 = arith.constant 0 : index
    %56 = vector.load %arg5[%c0_18, %c0_19] : memref<2x128xf32, #tpu.memory_space<vmem>>, vector<2x128xf32>
    tpu.vector_store %arg5[%c0_18, %c0_19], %55 {strides = array<i32>} : memref<2x128xf32, #tpu.memory_space<vmem>>, vector<2x128xf32>,
    return
  }
  func.func @transform_0(%arg0: i32) -> (i32, i32) {
    %c0_i32 = arith.constant 0 : i32
    %c0_i32_0 = arith.constant 0 : i32
    %c0_i32_1 = arith.constant 0 : i32
    return %c0_i32, %c0_i32_0 : i32, i32
  }
  func.func @transform_1(%arg0: i32) -> (i32, i32) {
    %c0_i32 = arith.constant 0 : i32
    %c0_i32_0 = arith.constant 0 : i32
    %c0_i32_1 = arith.constant 0 : i32
    return %c0_i32, %c0_i32_0 : i32, i32
  }
  func.func @transform_2(%arg0: i32) -> (i32, i32) {
    %c0_i32 = arith.constant 0 : i32
    %c0_i32_0 = arith.constant 0 : i32
    %c0_i32_1 = arith.constant 0 : i32
    return %c0_i32, %c0_i32_0 : i32, i32
  }
  func.func @transform_3(%arg0: i32) -> (i32, i32) {
    %c0_i32 = arith.constant 0 : i32
    %c0_i32_0 = arith.constant 0 : i32
    %c0_i32_1 = arith.constant 0 : i32
    return %c0_i32, %c0_i32_0 : i32, i32
  }
  func.func @transform_4(%arg0: i32) -> (i32, i32) {
    %c0_i32 = arith.constant 0 : i32
    %c0_i32_0 = arith.constant 0 : i32
    %c0_i32_1 = arith.constant 0 : i32
    return %c0_i32, %c0_i32_0 : i32, i32
  }
}

</mosaic_0001>

<llo_original>
// kernel: tpu_custom_call.1
$region0: #{tpu_custom_call.1}
  #allocation0 [shape = 'u32[]', space=smem, size = 0x4, offset = 0x4, fixed_abs, tag = 'smem constant byte address 0x4 - core index']
  #allocation1 [shape = 'u32[144,128]{1,0:T(1,128)}', space=vmem, size = 0x12000, scoped, tag = 'internal scratch']
  %s0 = inlined_call_operand.vmem [shape: s32[16,1], index: 0, kind: input, shape index: {}]
  %s1 = inlined_call_operand.vmem [shape: f32[8,4], index: 1, kind: input, shape index: {}]
  %s2 = inlined_call_operand.vmem [shape: f32[128,30], index: 2, kind: input, shape index: {}]
  %s3 = inlined_call_operand.vmem [shape: f32[104,128], index: 3, kind: input, shape index: {}]
  %s4 = inlined_call_operand.hbm [shape: f32[2,128], index: 4, kind: output, shape index: {}]
  %s5 = sld [smem:[#allocation0]]
  $region26: #{tpu_custom_call.1} parent=0
    _
  %s7 = ssub.s32 1, %s5
  %s8 = scalar_select 0, %s7, %s5
  $region1: #{tpu_custom_call.1} parent=0
    #allocation2 [shape = 'u8[1024]{0}', space=vmem, size = 0x400, scoped, tag = 'output window, operand 0, single buffered']
    #allocation3 [shape = 's32[1]{0}', space=sflag, size = 0x4, scoped, tag = 'scoped memory for tpu_custom_call.1']
    %9 = vsyncpa [#allocation3], 0
    // Predicated region
    $region2: #{tpu_custom_call.1} parent=1 // pred_check
      _
    $region3: #{tpu_custom_call.1} parent=1 // pred_check_branch
      %11 = sbr.rel (0) target = $region5
    $region4: #{tpu_custom_call.1} parent=1 // pred_region
      _
    $region5: #{tpu_custom_call.1} parent=1 // pred_fallthru
      _
    // Predicated region
    $region6: #{tpu_custom_call.1} parent=1 // pred_check
      _
    $region7: #{tpu_custom_call.1} parent=1 // pred_check_branch
      %13 = sbr.rel (0) target = $region9
    $region8: #{tpu_custom_call.1} parent=1 // pred_region
      _
    $region9: #{tpu_custom_call.1} parent=1 // pred_fallthru
      _
    // Predicated region
    $region10: #{tpu_custom_call.1} parent=1 // pred_check
      _
    $region11: #{tpu_custom_call.1} parent=1 // pred_check_branch
      %15 = sbr.rel (0) target = $region13
    $region12: #{tpu_custom_call.1} parent=1 // pred_region
      _
    $region13: #{tpu_custom_call.1} parent=1 // pred_fallthru
      _
    // Predicated region
    $region14: #{tpu_custom_call.1} parent=1 // pred_check
      _
    $region15: #{tpu_custom_call.1} parent=1 // pred_check_branch
      %17 = sbr.rel (0) target = $region17
    $region16: #{tpu_custom_call.1} parent=1 // pred_region
      _
    $region17: #{tpu_custom_call.1} parent=1 // pred_fallthru
      _
    %v18 = vld [vmem:[%s3] sm:$0xff]
    %v19 = vld [vmem:[%s3 + $0x8] sm:$0xff]
    %v20 = vld [vmem:[%s3 + $0x10] sm:$0xff]
    %v21 = vld [vmem:[%s3 + $0x18] sm:$0xff]
    %v22 = vld [vmem:[%s3 + $0x20] sm:$0xff]
    %v23 = vld [vmem:[%s3 + $0x28] sm:$0xff]
    %v24 = vld [vmem:[%s3 + $0x30] sm:$0xff]
    %v25 = vld [vmem:[%s3 + $0x38] sm:$0xff]
    %v26 = vld [vmem:[%s3 + $0x40] sm:$0xff]
    %v27 = vld [vmem:[%s3 + $0x48] sm:$0xff]
    %v28 = vld [vmem:[%s3 + $0x50] sm:$0xff]
    %v29 = vld [vmem:[%s3 + $0x58] sm:$0xff]
    %v30 = vld [vmem:[%s3 + $0x60] sm:$0xff]
    %v31 = vld [vmem:[%s2] sm:$0xff]
    %v32 = vld [vmem:[%s2 + $0x8] sm:$0xff]
    %v33 = vld [vmem:[%s2 + $0x10] sm:$0xff]
    %v34 = vld [vmem:[%s2 + $0x18] sm:$0xff]
    %v35 = vld [vmem:[%s2 + $0x20] sm:$0xff]
    %v36 = vld [vmem:[%s2 + $0x28] sm:$0xff]
    %v37 = vld [vmem:[%s2 + $0x30] sm:$0xff]
    %v38 = vld [vmem:[%s2 + $0x38] sm:$0xff]
    %v39 = vld [vmem:[%s2 + $0x40] sm:$0xff]
    %v40 = vld [vmem:[%s2 + $0x48] sm:$0xff]
    %v41 = vld [vmem:[%s2 + $0x50] sm:$0xff]
    %v42 = vld [vmem:[%s2 + $0x58] sm:$0xff]
    %v43 = vld [vmem:[%s2 + $0x60] sm:$0xff]
    %v44 = vld [vmem:[%s2 + $0x68] sm:$0xff]
    %v45 = vld [vmem:[%s2 + $0x70] sm:$0xff]
    %v46 = vld [vmem:[%s2 + $0x78] sm:$0xff]
    %v47 = vld [vmem:[%s0] sm:$0xff]
    %v48 = vld [vmem:[%s0 + $0x8] sm:$0xff]
    %v49 = vlaneseq
    %v50 = vand.u32 %v49, 127
    %51 = vset.pattern.permute.xlu0 0
    %52 = vperm.xlu0 %51, %v47
    %v53 = vpop.permute.xlu0 %52
    %54 = vset.pattern.permute.xlu0 0
    %55 = vperm.xlu0 %54, %v48
    %v56 = vpop.permute.xlu0 %55
    %vm57 = vcmp.eq.s32.totalorder %v53, %v50
    %vm58 = vcmp.eq.s32.totalorder %v56, %v50
    %v59 = vsel %vm57, 1, 0
    %v60 = vsel %vm58, 1, 0
    %v61 = vcvt.s32.f32 %v59
    %v62 = vcvt.s32.f32 %v60
    %vm63 = vcmask 72704
    %v65 = vsel %vm63, %v61, 0
    %v68 = vsel %vm63, %v62, 0
    %vm70 = vcmask 1040384
    %v72 = vsel %vm70, %v19, 0
    %74 = vmatprep.subr.mxu0 0.0
    %75 = vmatpush1.msra.mxu0 0.0
    %76 = vmatprep.subr.mxu0 0.0
    %77 = vmatpush1.msra.mxu0 0.0
    %78 = vmatprep.subr.mxu0 0.0
    %79 = vmatpush1.msra.mxu0 0.0
    %80 = vmatprep.subr.mxu0 0.0
    %81 = vmatpush1.msra.mxu0 0.0
    %82 = vmatprep.subr.mxu0 0.0
    %83 = vmatpush1.msra.mxu0 0.0
    %84 = vmatprep.subr.mxu0 0.0
    %85 = vmatpush1.msra.mxu0 0.0
    %86 = vmatprep.subr.mxu0 0.0
    %87 = vmatpush1.msra.mxu0 0.0
    %88 = vmatprep.subr.mxu0 0.0
    %89 = vmatpush1.msra.mxu0 0.0
    %90 = vmatprep.subr.mxu0 0.0
    %91 = vmatpush1.msra.mxu0 0.0
    %92 = vmatprep.subr.mxu0 0.0
    %93 = vmatpush1.msra.mxu0 0.0
    %94 = vmatprep.subr.mxu0 0.0
    %95 = vmatpush1.msra.mxu0 0.0
    %96 = vmatprep.subr.mxu0 0.0
    %97 = vmatpush1.msra.mxu0 0.0
    %98 = vmatprep.subr.mxu0 0.0
    %99 = vmatpush1.msra.mxu0 0.0
    %100 = vmatprep.subr.mxu0 0.0
    %101 = vmatpush1.msra.mxu0 0.0
    %102 = vmatprep.subr.mxu0 0.0
    %103 = vmatpush1.msra.mxu0 %v72
    %104 = vmatprep.subr.mxu0 0.0
    %105 = vmatpush1.msra.mxu0 %v18
    %106 = vmatprep.subr.mxu0 0.0
    %107 = vmatpush2.msra.mxu0 0.0
    %108 = vmatprep.subr.mxu0 0.0
    %109 = vmatpush2.msra.mxu0 0.0
    %110 = vmatprep.subr.mxu0 0.0
    %111 = vmatpush2.msra.mxu0 0.0
    %112 = vmatprep.subr.mxu0 0.0
    %113 = vmatpush2.msra.mxu0 0.0
    %114 = vmatprep.subr.mxu0 0.0
    %115 = vmatpush2.msra.mxu0 0.0
    %116 = vmatprep.subr.mxu0 0.0
    %117 = vmatpush2.msra.mxu0 0.0
    %118 = vmatprep.subr.mxu0 0.0
    %119 = vmatpush2.msra.mxu0 0.0
    %120 = vmatprep.subr.mxu0 0.0
    %121 = vmatpush2.msra.mxu0 0.0
    %122 = vmatprep.subr.mxu0 0.0
    %123 = vmatpush2.msra.mxu0 0.0
    %124 = vmatprep.subr.mxu0 0.0
    %125 = vmatpush2.msra.mxu0 0.0
    %126 = vmatprep.subr.mxu0 0.0
    %127 = vmatpush2.msra.mxu0 0.0
    %128 = vmatprep.subr.mxu0 0.0
    %129 = vmatpush2.msra.mxu0 0.0
    %130 = vmatprep.subr.mxu0 0.0
    %131 = vmatpush2.msra.mxu0 0.0
    %132 = vmatprep.subr.mxu0 0.0
    %133 = vmatpush2.msra.mxu0 0.0
    %134 = vmatprep.subr.mxu0 0.0
    %135 = vmatpush2.msra.mxu0 0.0
    %136 = vmatprep.subr.mxu0 0.0
    %137 = vmatpush2.msra.mxu0 0.0
    %138 = vmatprep.mubr.f32.mxu0 0.0
    %139 = vmatmul.mubr.f32.gmra.mxu0 %v65
    %v140 = vpop.f32.mrf.mxu0
    %v141 = vadd.f32 0.0, %v140
    %v142 = vpop.f32.mrf.mxu0
    %143 = vmatprep.mubr.f32.mxu0 0.0
    %144 = vmatmul.mubr.f32.gmra.mxu0 %v68
    %v145 = vpop.f32.mrf.mxu0
    %v146 = vadd.f32 0.0, %v145
    %v147 = vpop.f32.mrf.mxu0
    %148 = vdwg.mxu0
    %v150 = vrot.slane %v26, 4
    %vm151 = vcmask 31744
    %v153 = vsel %vm151, %v146, 0
    %vm155 = vcmask 1043456
    %v156 = vsel %vm155, %v150, 0
    %158 = vmatprep.subr.mxu0 0.0
    %159 = vmatpush1.msra.mxu0 0.0
    %160 = vmatprep.subr.mxu0 0.0
    %161 = vmatpush1.msra.mxu0 0.0
    %162 = vmatprep.subr.mxu0 0.0
    %163 = vmatpush1.msra.mxu0 0.0
    %164 = vmatprep.subr.mxu0 0.0
    %165 = vmatpush1.msra.mxu0 0.0
    %166 = vmatprep.subr.mxu0 0.0
    %167 = vmatpush1.msra.mxu0 0.0
    %168 = vmatprep.subr.mxu0 0.0
    %169 = vmatpush1.msra.mxu0 0.0
    %170 = vmatprep.subr.mxu0 0.0
    %171 = vmatpush1.msra.mxu0 0.0
    %172 = vmatprep.subr.mxu0 0.0
    %173 = vmatpush1.msra.mxu0 0.0
    %174 = vmatprep.subr.mxu0 0.0
    %175 = vmatpush1.msra.mxu0 0.0
    %176 = vmatprep.subr.mxu0 0.0
    %177 = vmatpush1.msra.mxu0 0.0
    %178 = vmatprep.subr.mxu0 0.0
    %179 = vmatpush1.msra.mxu0 0.0
    %180 = vmatprep.subr.mxu0 0.0
    %181 = vmatpush1.msra.mxu0 0.0
    %182 = vmatprep.subr.mxu0 0.0
    %183 = vmatpush1.msra.mxu0 0.0
    %184 = vmatprep.subr.mxu0 0.0
    %185 = vmatpush1.msra.mxu0 0.0
    %186 = vmatprep.subr.mxu0 0.0
    %187 = vmatpush1.msra.mxu0 0.0
    %188 = vmatprep.subr.mxu0 0.0
    %189 = vmatpush1.msra.mxu0 %v156
    %190 = vmatprep.subr.mxu0 0.0
    %191 = vmatpush2.msra.mxu0 0.0
    %192 = vmatprep.subr.mxu0 0.0
    %193 = vmatpush2.msra.mxu0 0.0
    %194 = vmatprep.subr.mxu0 0.0
    %195 = vmatpush2.msra.mxu0 0.0
    %196 = vmatprep.subr.mxu0 0.0
    %197 = vmatpush2.msra.mxu0 0.0
    %198 = vmatprep.subr.mxu0 0.0
    %199 = vmatpush2.msra.mxu0 0.0
    %200 = vmatprep.subr.mxu0 0.0
    %201 = vmatpush2.msra.mxu0 0.0
    %202 = vmatprep.subr.mxu0 0.0
    %203 = vmatpush2.msra.mxu0 0.0
    %204 = vmatprep.subr.mxu0 0.0
    %205 = vmatpush2.msra.mxu0 0.0
    %206 = vmatprep.subr.mxu0 0.0
    %207 = vmatpush2.msra.mxu0 0.0
    %208 = vmatprep.subr.mxu0 0.0
    %209 = vmatpush2.msra.mxu0 0.0
    %210 = vmatprep.subr.mxu0 0.0
    %211 = vmatpush2.msra.mxu0 0.0
    %212 = vmatprep.subr.mxu0 0.0
    %213 = vmatpush2.msra.mxu0 0.0
    %214 = vmatprep.subr.mxu0 0.0
    %215 = vmatpush2.msra.mxu0 0.0
    %216 = vmatprep.subr.mxu0 0.0
    %217 = vmatpush2.msra.mxu0 0.0
    %218 = vmatprep.subr.mxu0 0.0
    %219 = vmatpush2.msra.mxu0 0.0
    %220 = vmatprep.subr.mxu0 0.0
    %221 = vmatpush2.msra.mxu0 0.0
    %222 = vmatprep.mubr.f32.mxu0 0.0
    %223 = vmatmul.mubr.f32.gmra.mxu0 %v153
    %v224 = vpop.f32.mrf.mxu0
    %v225 = vadd.f32 0.0, %v224
    %v226 = vpop.f32.mrf.mxu0
    %227 = vdwg.mxu0
    %v229 = vsel %vm151, %v141, 0
    %v231 = vsel %vm155, %v26, 0
    %233 = vmatprep.subr.mxu0 0.0
    %234 = vmatpush1.msra.mxu0 0.0
    %235 = vmatprep.subr.mxu0 0.0
    %236 = vmatpush1.msra.mxu0 0.0
    %237 = vmatprep.subr.mxu0 0.0
    %238 = vmatpush1.msra.mxu0 0.0
    %239 = vmatprep.subr.mxu0 0.0
    %240 = vmatpush1.msra.mxu0 0.0
    %241 = vmatprep.subr.mxu0 0.0
    %242 = vmatpush1.msra.mxu0 0.0
    %243 = vmatprep.subr.mxu0 0.0
    %244 = vmatpush1.msra.mxu0 0.0
    %245 = vmatprep.subr.mxu0 0.0
    %246 = vmatpush1.msra.mxu0 0.0
    %247 = vmatprep.subr.mxu0 0.0
    %248 = vmatpush1.msra.mxu0 0.0
    %249 = vmatprep.subr.mxu0 0.0
    %250 = vmatpush1.msra.mxu0 0.0
    %251 = vmatprep.subr.mxu0 0.0
    %252 = vmatpush1.msra.mxu0 0.0
    %253 = vmatprep.subr.mxu0 0.0
    %254 = vmatpush1.msra.mxu0 0.0
    %255 = vmatprep.subr.mxu0 0.0
    %256 = vmatpush1.msra.mxu0 0.0
    %257 = vmatprep.subr.mxu0 0.0
    %258 = vmatpush1.msra.mxu0 0.0
    %259 = vmatprep.subr.mxu0 0.0
    %260 = vmatpush1.msra.mxu0 0.0
    %261 = vmatprep.subr.mxu0 0.0
    %262 = vmatpush1.msra.mxu0 0.0
    %263 = vmatprep.subr.mxu0 0.0
    %264 = vmatpush1.msra.mxu0 %v231
    %265 = vmatprep.subr.mxu0 0.0
    %266 = vmatpush2.msra.mxu0 0.0
    %267 = vmatprep.subr.mxu0 0.0
    %268 = vmatpush2.msra.mxu0 0.0
    %269 = vmatprep.subr.mxu0 0.0
    %270 = vmatpush2.msra.mxu0 0.0
    %271 = vmatprep.subr.mxu0 0.0
    %272 = vmatpush2.msra.mxu0 0.0
    %273 = vmatprep.subr.mxu0 0.0
    %274 = vmatpush2.msra.mxu0 0.0
    %275 = vmatprep.subr.mxu0 0.0
    %276 = vmatpush2.msra.mxu0 0.0
    %277 = vmatprep.subr.mxu0 0.0
    %278 = vmatpush2.msra.mxu0 0.0
    %279 = vmatprep.subr.mxu0 0.0
    %280 = vmatpush2.msra.mxu0 0.0
    %281 = vmatprep.subr.mxu0 0.0
    %282 = vmatpush2.msra.mxu0 0.0
    %283 = vmatprep.subr.mxu0 0.0
    %284 = vmatpush2.msra.mxu0 0.0
    %285 = vmatprep.subr.mxu0 0.0
    %286 = vmatpush2.msra.mxu0 0.0
    %287 = vmatprep.subr.mxu0 0.0
    %288 = vmatpush2.msra.mxu0 0.0
    %289 = vmatprep.subr.mxu0 0.0
    %290 = vmatpush2.msra.mxu0 0.0
    %291 = vmatprep.subr.mxu0 0.0
    %292 = vmatpush2.msra.mxu0 0.0
    %293 = vmatprep.subr.mxu0 0.0
    %294 = vmatpush2.msra.mxu0 0.0
    %295 = vmatprep.subr.mxu0 0.0
    %296 = vmatpush2.msra.mxu0 0.0
    %297 = vmatprep.mubr.f32.mxu0 0.0
    %298 = vmatmul.mubr.f32.gmra.mxu0 %v229
    %v299 = vpop.f32.mrf.mxu0
    %v300 = vadd.f32 %v225, %v299
    %v301 = vpop.f32.mrf.mxu0
    %302 = vdwg.mxu0
    %v303 = vld [vmem:[%s1] sm:$0xff]
    %v305 = vsel %vm151, %v303, 0
    %v308 = vsel %vm155, %v27, 0
    %310 = vmatprep.subr.mxu0 0.0
    %311 = vmatpush1.msra.mxu0 0.0
    %312 = vmatprep.subr.mxu0 0.0
    %313 = vmatpush1.msra.mxu0 0.0
    %314 = vmatprep.subr.mxu0 0.0
    %315 = vmatpush1.msra.mxu0 0.0
    %316 = vmatprep.subr.mxu0 0.0
    %317 = vmatpush1.msra.mxu0 0.0
    %318 = vmatprep.subr.mxu0 0.0
    %319 = vmatpush1.msra.mxu0 0.0
    %320 = vmatprep.subr.mxu0 0.0
    %321 = vmatpush1.msra.mxu0 0.0
    %322 = vmatprep.subr.mxu0 0.0
    %323 = vmatpush1.msra.mxu0 0.0
    %324 = vmatprep.subr.mxu0 0.0
    %325 = vmatpush1.msra.mxu0 0.0
    %326 = vmatprep.subr.mxu0 0.0
    %327 = vmatpush1.msra.mxu0 0.0
    %328 = vmatprep.subr.mxu0 0.0
    %329 = vmatpush1.msra.mxu0 0.0
    %330 = vmatprep.subr.mxu0 0.0
    %331 = vmatpush1.msra.mxu0 0.0
    %332 = vmatprep.subr.mxu0 0.0
    %333 = vmatpush1.msra.mxu0 0.0
    %334 = vmatprep.subr.mxu0 0.0
    %335 = vmatpush1.msra.mxu0 0.0
    %336 = vmatprep.subr.mxu0 0.0
    %337 = vmatpush1.msra.mxu0 0.0
    %338 = vmatprep.subr.mxu0 0.0
    %339 = vmatpush1.msra.mxu0 0.0
    %340 = vmatprep.subr.mxu0 0.0
    %341 = vmatpush1.msra.mxu0 %v308
    %342 = vmatprep.subr.mxu0 0.0
    %343 = vmatpush2.msra.mxu0 0.0
    %344 = vmatprep.subr.mxu0 0.0
    %345 = vmatpush2.msra.mxu0 0.0
    %346 = vmatprep.subr.mxu0 0.0
    %347 = vmatpush2.msra.mxu0 0.0
    %348 = vmatprep.subr.mxu0 0.0
    %349 = vmatpush2.msra.mxu0 0.0
    %350 = vmatprep.subr.mxu0 0.0
    %351 = vmatpush2.msra.mxu0 0.0
    %352 = vmatprep.subr.mxu0 0.0
    %353 = vmatpush2.msra.mxu0 0.0
    %354 = vmatprep.subr.mxu0 0.0
    %355 = vmatpush2.msra.mxu0 0.0
    %356 = vmatprep.subr.mxu0 0.0
    %357 = vmatpush2.msra.mxu0 0.0
    %358 = vmatprep.subr.mxu0 0.0
    %359 = vmatpush2.msra.mxu0 0.0
    %360 = vmatprep.subr.mxu0 0.0
    %361 = vmatpush2.msra.mxu0 0.0
    %362 = vmatprep.subr.mxu0 0.0
    %363 = vmatpush2.msra.mxu0 0.0
    %364 = vmatprep.subr.mxu0 0.0
    %365 = vmatpush2.msra.mxu0 0.0
    %366 = vmatprep.subr.mxu0 0.0
    %367 = vmatpush2.msra.mxu0 0.0
    %368 = vmatprep.subr.mxu0 0.0
    %369 = vmatpush2.msra.mxu0 0.0
    %370 = vmatprep.subr.mxu0 0.0
    %371 = vmatpush2.msra.mxu0 0.0
    %372 = vmatprep.subr.mxu0 0.0
    %373 = vmatpush2.msra.mxu0 0.0
    %374 = vmatprep.mubr.f32.mxu0 0.0
    %375 = vmatmul.mubr.f32.gmra.mxu0 %v305
    %v376 = vpop.f32.mrf.mxu0
    %v377 = vadd.f32 0.0, %v376
    %v378 = vpop.f32.mrf.mxu0
    %379 = vdwg.mxu0
    %v380 = vadd.f32 %v300, %v377
    %v381 = vlaneseq
    %v382 = vshrl.u32 %v381, 7
    %v383 = vsub.s32 0, %v382
    %v384 = vrot.slane %v25, %v383
    %vm385 = vcmask 97280
    %v387 = vsel %vm385, %v31, 0
    %v390 = vsel %vm385, %v32, 0
    %v393 = vsel %vm385, %v33, 0
    %v396 = vsel %vm385, %v34, 0
    %v399 = vsel %vm385, %v35, 0
    %v402 = vsel %vm385, %v36, 0
    %v405 = vsel %vm385, %v37, 0
    %v408 = vsel %vm385, %v38, 0
    %v411 = vsel %vm385, %v39, 0
    %v414 = vsel %vm385, %v40, 0
    %v417 = vsel %vm385, %v41, 0
    %v420 = vsel %vm385, %v42, 0
    %v423 = vsel %vm385, %v43, 0
    %v426 = vsel %vm385, %v44, 0
    %v429 = vsel %vm385, %v45, 0
    %v432 = vsel %vm385, %v46, 0
    %v435 = vsel %vm155, %v21, 0
    %437 = vmatprep.subr.mxu0 0.0
    %438 = vmatpush1.msra.mxu0 0.0
    %439 = vmatprep.subr.mxu0 0.0
    %440 = vmatpush1.msra.mxu0 0.0
    %441 = vmatprep.subr.mxu0 0.0
    %442 = vmatpush1.msra.mxu0 0.0
    %443 = vmatprep.subr.mxu0 0.0
    %444 = vmatpush1.msra.mxu0 0.0
    %445 = vmatprep.subr.mxu0 0.0
    %446 = vmatpush1.msra.mxu0 0.0
    %447 = vmatprep.subr.mxu0 0.0
    %448 = vmatpush1.msra.mxu0 0.0
    %449 = vmatprep.subr.mxu0 0.0
    %450 = vmatpush1.msra.mxu0 0.0
    %451 = vmatprep.subr.mxu0 0.0
    %452 = vmatpush1.msra.mxu0 0.0
    %453 = vmatprep.subr.mxu0 0.0
    %454 = vmatpush1.msra.mxu0 0.0
    %455 = vmatprep.subr.mxu0 0.0
    %456 = vmatpush1.msra.mxu0 0.0
    %457 = vmatprep.subr.mxu0 0.0
    %458 = vmatpush1.msra.mxu0 0.0
    %459 = vmatprep.subr.mxu0 0.0
    %460 = vmatpush1.msra.mxu0 0.0
    %461 = vmatprep.subr.mxu0 0.0
    %462 = vmatpush1.msra.mxu0 0.0
    %463 = vmatprep.subr.mxu0 0.0
    %464 = vmatpush1.msra.mxu0 0.0
    %465 = vmatprep.subr.mxu0 0.0
    %466 = vmatpush1.msra.mxu0 %v435
    %467 = vmatprep.subr.mxu0 0.0
    %468 = vmatpush1.msra.mxu0 %v20
    %469 = vmatprep.subr.mxu0 0.0
    %470 = vmatpush2.msra.mxu0 0.0
    %471 = vmatprep.subr.mxu0 0.0
    %472 = vmatpush2.msra.mxu0 0.0
    %473 = vmatprep.subr.mxu0 0.0
    %474 = vmatpush2.msra.mxu0 0.0
    %475 = vmatprep.subr.mxu0 0.0
    %476 = vmatpush2.msra.mxu0 0.0
    %477 = vmatprep.subr.mxu0 0.0
    %478 = vmatpush2.msra.mxu0 0.0
    %479 = vmatprep.subr.mxu0 0.0
    %480 = vmatpush2.msra.mxu0 0.0
    %481 = vmatprep.subr.mxu0 0.0
    %482 = vmatpush2.msra.mxu0 0.0
    %483 = vmatprep.subr.mxu0 0.0
    %484 = vmatpush2.msra.mxu0 0.0
    %485 = vmatprep.subr.mxu0 0.0
    %486 = vmatpush2.msra.mxu0 0.0
    %487 = vmatprep.subr.mxu0 0.0
    %488 = vmatpush2.msra.mxu0 0.0
    %489 = vmatprep.subr.mxu0 0.0
    %490 = vmatpush2.msra.mxu0 0.0
    %491 = vmatprep.subr.mxu0 0.0
    %492 = vmatpush2.msra.mxu0 0.0
    %493 = vmatprep.subr.mxu0 0.0
    %494 = vmatpush2.msra.mxu0 0.0
    %495 = vmatprep.subr.mxu0 0.0
    %496 = vmatpush2.msra.mxu0 0.0
    %497 = vmatprep.subr.mxu0 0.0
    %498 = vmatpush2.msra.mxu0 0.0
    %499 = vmatprep.subr.mxu0 0.0
    %500 = vmatpush2.msra.mxu0 0.0
    %501 = vmatprep.mubr.f32.mxu0 0.0
    %502 = vmatmul.mubr.f32.gmra.mxu0 %v387
    %v503 = vpop.f32.mrf.mxu0
    %v504 = vadd.f32 %v384, %v503
    %v505 = vpop.f32.mrf.mxu0
    %506 = vmatprep.mubr.f32.mxu0 0.0
    %507 = vmatmul.mubr.f32.gmra.mxu0 %v390
    %v508 = vpop.f32.mrf.mxu0
    %v509 = vadd.f32 %v384, %v508
    %v510 = vpop.f32.mrf.mxu0
    %511 = vmatprep.mubr.f32.mxu0 0.0
    %512 = vmatmul.mubr.f32.gmra.mxu0 %v393
    %v513 = vpop.f32.mrf.mxu0
    %v514 = vadd.f32 %v384, %v513
    %v515 = vpop.f32.mrf.mxu0
    %516 = vmatprep.mubr.f32.mxu0 0.0
    %517 = vmatmul.mubr.f32.gmra.mxu0 %v396
    %v518 = vpop.f32.mrf.mxu0
    %v519 = vadd.f32 %v384, %v518
    %v520 = vpop.f32.mrf.mxu0
    %521 = vmatprep.mubr.f32.mxu0 0.0
    %522 = vmatmul.mubr.f32.gmra.mxu0 %v399
    %v523 = vpop.f32.mrf.mxu0
    %v524 = vadd.f32 %v384, %v523
    %v525 = vpop.f32.mrf.mxu0
    %526 = vmatprep.mubr.f32.mxu0 0.0
    %527 = vmatmul.mubr.f32.gmra.mxu0 %v402
    %v528 = vpop.f32.mrf.mxu0
    %v529 = vadd.f32 %v384, %v528
    %v530 = vpop.f32.mrf.mxu0
    %531 = vmatprep.mubr.f32.mxu0 0.0
    %532 = vmatmul.mubr.f32.gmra.mxu0 %v405
    %v533 = vpop.f32.mrf.mxu0
    %v534 = vadd.f32 %v384, %v533
    %v535 = vpop.f32.mrf.mxu0
    %536 = vmatprep.mubr.f32.mxu0 0.0
    %537 = vmatmul.mubr.f32.gmra.mxu0 %v408
    %v538 = vpop.f32.mrf.mxu0
    %v539 = vadd.f32 %v384, %v538
    %v540 = vpop.f32.mrf.mxu0
    %541 = vmatprep.mubr.f32.mxu0 0.0
    %542 = vmatmul.mubr.f32.gmra.mxu0 %v411
    %v543 = vpop.f32.mrf.mxu0
    %v544 = vadd.f32 %v384, %v543
    %v545 = vpop.f32.mrf.mxu0
    %546 = vmatprep.mubr.f32.mxu0 0.0
    %547 = vmatmul.mubr.f32.gmra.mxu0 %v414
    %v548 = vpop.f32.mrf.mxu0
    %v549 = vadd.f32 %v384, %v548
    %v550 = vpop.f32.mrf.mxu0
    %551 = vmatprep.mubr.f32.mxu0 0.0
    %552 = vmatmul.mubr.f32.gmra.mxu0 %v417
    %v553 = vpop.f32.mrf.mxu0
    %v554 = vadd.f32 %v384, %v553
    %v555 = vpop.f32.mrf.mxu0
    %556 = vmatprep.mubr.f32.mxu0 0.0
    %557 = vmatmul.mubr.f32.gmra.mxu0 %v420
    %v558 = vpop.f32.mrf.mxu0
    %v559 = vadd.f32 %v384, %v558
    %v560 = vpop.f32.mrf.mxu0
    %561 = vmatprep.mubr.f32.mxu0 0.0
    %562 = vmatmul.mubr.f32.gmra.mxu0 %v423
    %v563 = vpop.f32.mrf.mxu0
    %v564 = vadd.f32 %v384, %v563
    %v565 = vpop.f32.mrf.mxu0
    %566 = vmatprep.mubr.f32.mxu0 0.0
    %567 = vmatmul.mubr.f32.gmra.mxu0 %v426
    %v568 = vpop.f32.mrf.mxu0
    %v569 = vadd.f32 %v384, %v568
    %v570 = vpop.f32.mrf.mxu0
    %571 = vmatprep.mubr.f32.mxu0 0.0
    %572 = vmatmul.mubr.f32.gmra.mxu0 %v429
    %v573 = vpop.f32.mrf.mxu0
    %v574 = vadd.f32 %v384, %v573
    %v575 = vpop.f32.mrf.mxu0
    %576 = vmatprep.mubr.f32.mxu0 0.0
    %577 = vmatmul.mubr.f32.gmra.mxu0 %v432
    %v578 = vpop.f32.mrf.mxu0
    %v579 = vadd.f32 %v384, %v578
    %v580 = vpop.f32.mrf.mxu0
    %581 = vdwg.mxu0
    %v582 = vmax.f32 %v504, 0.0
    %v583 = vmax.f32 %v509, 0.0
    %v584 = vmax.f32 %v514, 0.0
    %v585 = vmax.f32 %v519, 0.0
    %v586 = vmax.f32 %v524, 0.0
    %v587 = vmax.f32 %v529, 0.0
    %v588 = vmax.f32 %v534, 0.0
    %v589 = vmax.f32 %v539, 0.0
    %v590 = vmax.f32 %v544, 0.0
    %v591 = vmax.f32 %v549, 0.0
    %v592 = vmax.f32 %v554, 0.0
    %v593 = vmax.f32 %v559, 0.0
    %v594 = vmax.f32 %v564, 0.0
    %v595 = vmax.f32 %v569, 0.0
    %v596 = vmax.f32 %v574, 0.0
    %v597 = vmax.f32 %v579, 0.0
    %vm598 = vcmask 64512
    %v599 = vsel %vm598, %v582, -inf
    %v600 = vsel %vm598, %v583, -inf
    %v601 = vmax.f32 %v599, %v600
    %v602 = vrot.slane %v601, 4
    %v603 = vmax.f32 %v601, %v602
    %v604 = vrot.slane %v603, 2
    %v605 = vmax.f32 %v603, %v604
    %v606 = vrot.slane %v605, 1
    %v607 = vmax.f32 %v605, %v606
    %v608 = vsel %vm598, %v584, -inf
    %v609 = vsel %vm598, %v585, -inf
    %v610 = vmax.f32 %v608, %v609
    %v611 = vrot.slane %v610, 4
    %v612 = vmax.f32 %v610, %v611
    %v613 = vrot.slane %v612, 2
    %v614 = vmax.f32 %v612, %v613
    %v615 = vrot.slane %v614, 1
    %v616 = vmax.f32 %v614, %v615
    %v617 = vsel %vm598, %v586, -inf
    %v618 = vsel %vm598, %v587, -inf
    %v619 = vmax.f32 %v617, %v618
    %v620 = vrot.slane %v619, 4
    %v621 = vmax.f32 %v619, %v620
    %v622 = vrot.slane %v621, 2
    %v623 = vmax.f32 %v621, %v622
    %v624 = vrot.slane %v623, 1
    %v625 = vmax.f32 %v623, %v624
    %v626 = vsel %vm598, %v588, -inf
    %v627 = vsel %vm598, %v589, -inf
    %v628 = vmax.f32 %v626, %v627
    %v629 = vrot.slane %v628, 4
    %v630 = vmax.f32 %v628, %v629
    %v631 = vrot.slane %v630, 2
    %v632 = vmax.f32 %v630, %v631
    %v633 = vrot.slane %v632, 1
    %v634 = vmax.f32 %v632, %v633
    %v635 = vsel %vm598, %v590, -inf
    %v636 = vsel %vm598, %v591, -inf
    %v637 = vmax.f32 %v635, %v636
    %v638 = vrot.slane %v637, 4
    %v639 = vmax.f32 %v637, %v638
    %v640 = vrot.slane %v639, 2
    %v641 = vmax.f32 %v639, %v640
    %v642 = vrot.slane %v641, 1
    %v643 = vmax.f32 %v641, %v642
    %v644 = vsel %vm598, %v592, -inf
    %v645 = vsel %vm598, %v593, -inf
    %v646 = vmax.f32 %v644, %v645
    %v647 = vrot.slane %v646, 4
    %v648 = vmax.f32 %v646, %v647
    %v649 = vrot.slane %v648, 2
    %v650 = vmax.f32 %v648, %v649
    %v651 = vrot.slane %v650, 1
    %v652 = vmax.f32 %v650, %v651
    %v653 = vsel %vm598, %v594, -inf
    %v654 = vsel %vm598, %v595, -inf
    %v655 = vmax.f32 %v653, %v654
    %v656 = vrot.slane %v655, 4
    %v657 = vmax.f32 %v655, %v656
    %v658 = vrot.slane %v657, 2
    %v659 = vmax.f32 %v657, %v658
    %v660 = vrot.slane %v659, 1
    %v661 = vmax.f32 %v659, %v660
    %v662 = vsel %vm598, %v596, -inf
    %v663 = vsel %vm598, %v597, -inf
    %v664 = vmax.f32 %v662, %v663
    %v665 = vrot.slane %v664, 4
    %v666 = vmax.f32 %v664, %v665
    %v667 = vrot.slane %v666, 2
    %v668 = vmax.f32 %v666, %v667
    %v669 = vrot.slane %v668, 1
    %v670 = vmax.f32 %v668, %v669
    %vm679 = vcmask 1041409
    %v680 = vsel %vm679, %v616, %v607
    %vm681 = vcmask 1042434
    %v682 = vsel %vm681, %v625, %v680
    %vm683 = vcmask 1043459
    %v684 = vsel %vm683, %v634, %v682
    %vm685 = vcmask 1044484
    %v686 = vsel %vm685, %v643, %v684
    %vm687 = vcmask 1045509
    %v688 = vsel %vm687, %v652, %v686
    %vm689 = vcmask 1046534
    %v690 = vsel %vm689, %v661, %v688
    %vm691 = vcmask 1047559
    %v692 = vsel %vm691, %v670, %v690
    %v694 = vrot.slane %v27, 4
    %v695 = vrot.slane %v28, 4
    %v696 = vsel %vm155, %v694, %v695
    %v698 = vsel %vm598, %v692, 0
    %700 = vmatprep.subr.mxu0 0.0
    %701 = vmatpush1.msra.mxu0 0.0
    %702 = vmatprep.subr.mxu0 0.0
    %703 = vmatpush1.msra.mxu0 0.0
    %704 = vmatprep.subr.mxu0 0.0
    %705 = vmatpush1.msra.mxu0 0.0
    %706 = vmatprep.subr.mxu0 0.0
    %707 = vmatpush1.msra.mxu0 0.0
    %708 = vmatprep.subr.mxu0 0.0
    %709 = vmatpush1.msra.mxu0 0.0
    %710 = vmatprep.subr.mxu0 0.0
    %711 = vmatpush1.msra.mxu0 0.0
    %712 = vmatprep.subr.mxu0 0.0
    %713 = vmatpush1.msra.mxu0 0.0
    %714 = vmatprep.subr.mxu0 0.0
    %715 = vmatpush1.msra.mxu0 0.0
    %716 = vmatprep.subr.mxu0 0.0
    %717 = vmatpush1.msra.mxu0 0.0
    %718 = vmatprep.subr.mxu0 0.0
    %719 = vmatpush1.msra.mxu0 0.0
    %720 = vmatprep.subr.mxu0 0.0
    %721 = vmatpush1.msra.mxu0 0.0
    %722 = vmatprep.subr.mxu0 0.0
    %723 = vmatpush1.msra.mxu0 0.0
    %724 = vmatprep.subr.mxu0 0.0
    %725 = vmatpush1.msra.mxu0 0.0
    %726 = vmatprep.subr.mxu0 0.0
    %727 = vmatpush1.msra.mxu0 0.0
    %728 = vmatprep.subr.mxu0 0.0
    %729 = vmatpush1.msra.mxu0 0.0
    %730 = vmatprep.subr.mxu0 0.0
    %731 = vmatpush1.msra.mxu0 %v696
    %732 = vmatprep.subr.mxu0 0.0
    %733 = vmatpush2.msra.mxu0 0.0
    %734 = vmatprep.subr.mxu0 0.0
    %735 = vmatpush2.msra.mxu0 0.0
    %736 = vmatprep.subr.mxu0 0.0
    %737 = vmatpush2.msra.mxu0 0.0
    %738 = vmatprep.subr.mxu0 0.0
    %739 = vmatpush2.msra.mxu0 0.0
    %740 = vmatprep.subr.mxu0 0.0
    %741 = vmatpush2.msra.mxu0 0.0
    %742 = vmatprep.subr.mxu0 0.0
    %743 = vmatpush2.msra.mxu0 0.0
    %744 = vmatprep.subr.mxu0 0.0
    %745 = vmatpush2.msra.mxu0 0.0
    %746 = vmatprep.subr.mxu0 0.0
    %747 = vmatpush2.msra.mxu0 0.0
    %748 = vmatprep.subr.mxu0 0.0
    %749 = vmatpush2.msra.mxu0 0.0
    %750 = vmatprep.subr.mxu0 0.0
    %751 = vmatpush2.msra.mxu0 0.0
    %752 = vmatprep.subr.mxu0 0.0
    %753 = vmatpush2.msra.mxu0 0.0
    %754 = vmatprep.subr.mxu0 0.0
    %755 = vmatpush2.msra.mxu0 0.0
    %756 = vmatprep.subr.mxu0 0.0
    %757 = vmatpush2.msra.mxu0 0.0
    %758 = vmatprep.subr.mxu0 0.0
    %759 = vmatpush2.msra.mxu0 0.0
    %760 = vmatprep.subr.mxu0 0.0
    %761 = vmatpush2.msra.mxu0 0.0
    %762 = vmatprep.subr.mxu0 0.0
    %763 = vmatpush2.msra.mxu0 0.0
    %764 = vmatprep.mubr.f32.mxu0 0.0
    %765 = vmatmul.mubr.f32.gmra.mxu0 %v698
    %v766 = vpop.f32.mrf.mxu0
    %v767 = vadd.f32 0.0, %v766
    %v768 = vpop.f32.mrf.mxu0
    %769 = vdwg.mxu0
    %v770 = vadd.f32 %v380, %v767
    %v771 = vlaneseq
    %v772 = vshrl.u32 %v771, 7
    %v773 = vsub.s32 1, %v772
    %v774 = vrot.slane %v25, %v773
    %775 = vrot.lane.b32.xlu0 %v31, 116
    %v776 = vpop.permute.xlu0 %775
    %777 = vrot.lane.b32.xlu0 %v32, 116
    %v778 = vpop.permute.xlu0 %777
    %779 = vrot.lane.b32.xlu0 %v33, 116
    %v780 = vpop.permute.xlu0 %779
    %781 = vrot.lane.b32.xlu0 %v34, 116
    %v782 = vpop.permute.xlu0 %781
    %783 = vrot.lane.b32.xlu0 %v35, 116
    %v784 = vpop.permute.xlu0 %783
    %785 = vrot.lane.b32.xlu0 %v36, 116
    %v786 = vpop.permute.xlu0 %785
    %787 = vrot.lane.b32.xlu0 %v37, 116
    %v788 = vpop.permute.xlu0 %787
    %789 = vrot.lane.b32.xlu0 %v38, 116
    %v790 = vpop.permute.xlu0 %789
    %791 = vrot.lane.b32.xlu0 %v39, 116
    %v792 = vpop.permute.xlu0 %791
    %793 = vrot.lane.b32.xlu0 %v40, 116
    %v794 = vpop.permute.xlu0 %793
    %795 = vrot.lane.b32.xlu0 %v41, 116
    %v796 = vpop.permute.xlu0 %795
    %797 = vrot.lane.b32.xlu0 %v42, 116
    %v798 = vpop.permute.xlu0 %797
    %799 = vrot.lane.b32.xlu0 %v43, 116
    %v800 = vpop.permute.xlu0 %799
    %801 = vrot.lane.b32.xlu0 %v44, 116
    %v802 = vpop.permute.xlu0 %801
    %803 = vrot.lane.b32.xlu0 %v45, 116
    %v804 = vpop.permute.xlu0 %803
    %805 = vrot.lane.b32.xlu0 %v46, 116
    %v806 = vpop.permute.xlu0 %805
    %vm807 = vcmask 146432
    %v808 = vsel %vm807, %v776, 0
    %v810 = vsel %vm807, %v778, 0
    %v812 = vsel %vm807, %v780, 0
    %v814 = vsel %vm807, %v782, 0
    %v816 = vsel %vm807, %v784, 0
    %v818 = vsel %vm807, %v786, 0
    %v820 = vsel %vm807, %v788, 0
    %v822 = vsel %vm807, %v790, 0
    %v824 = vsel %vm807, %v792, 0
    %v826 = vsel %vm807, %v794, 0
    %v828 = vsel %vm807, %v796, 0
    %v830 = vsel %vm807, %v798, 0
    %v832 = vsel %vm807, %v800, 0
    %v834 = vsel %vm807, %v802, 0
    %v836 = vsel %vm807, %v804, 0
    %v838 = vsel %vm807, %v806, 0
    %vm840 = vcmask 1041408
    %v842 = vsel %vm840, %v24, 0
    %844 = vmatprep.subr.mxu0 0.0
    %845 = vmatpush1.msra.mxu0 0.0
    %846 = vmatprep.subr.mxu0 0.0
    %847 = vmatpush1.msra.mxu0 0.0
    %848 = vmatprep.subr.mxu0 0.0
    %849 = vmatpush1.msra.mxu0 0.0
    %850 = vmatprep.subr.mxu0 0.0
    %851 = vmatpush1.msra.mxu0 0.0
    %852 = vmatprep.subr.mxu0 0.0
    %853 = vmatpush1.msra.mxu0 0.0
    %854 = vmatprep.subr.mxu0 0.0
    %855 = vmatpush1.msra.mxu0 0.0
    %856 = vmatprep.subr.mxu0 0.0
    %857 = vmatpush1.msra.mxu0 0.0
    %858 = vmatprep.subr.mxu0 0.0
    %859 = vmatpush1.msra.mxu0 0.0
    %860 = vmatprep.subr.mxu0 0.0
    %861 = vmatpush1.msra.mxu0 0.0
    %862 = vmatprep.subr.mxu0 0.0
    %863 = vmatpush1.msra.mxu0 0.0
    %864 = vmatprep.subr.mxu0 0.0
    %865 = vmatpush1.msra.mxu0 0.0
    %866 = vmatprep.subr.mxu0 0.0
    %867 = vmatpush1.msra.mxu0 0.0
    %868 = vmatprep.subr.mxu0 0.0
    %869 = vmatpush1.msra.mxu0 0.0
    %870 = vmatprep.subr.mxu0 0.0
    %871 = vmatpush1.msra.mxu0 %v842
    %872 = vmatprep.subr.mxu0 0.0
    %873 = vmatpush1.msra.mxu0 %v23
    %874 = vmatprep.subr.mxu0 0.0
    %875 = vmatpush1.msra.mxu0 %v22
    %876 = vmatprep.subr.mxu0 0.0
    %877 = vmatpush2.msra.mxu0 0.0
    %878 = vmatprep.subr.mxu0 0.0
    %879 = vmatpush2.msra.mxu0 0.0
    %880 = vmatprep.subr.mxu0 0.0
    %881 = vmatpush2.msra.mxu0 0.0
    %882 = vmatprep.subr.mxu0 0.0
    %883 = vmatpush2.msra.mxu0 0.0
    %884 = vmatprep.subr.mxu0 0.0
    %885 = vmatpush2.msra.mxu0 0.0
    %886 = vmatprep.subr.mxu0 0.0
    %887 = vmatpush2.msra.mxu0 0.0
    %888 = vmatprep.subr.mxu0 0.0
    %889 = vmatpush2.msra.mxu0 0.0
    %890 = vmatprep.subr.mxu0 0.0
    %891 = vmatpush2.msra.mxu0 0.0
    %892 = vmatprep.subr.mxu0 0.0
    %893 = vmatpush2.msra.mxu0 0.0
    %894 = vmatprep.subr.mxu0 0.0
    %895 = vmatpush2.msra.mxu0 0.0
    %896 = vmatprep.subr.mxu0 0.0
    %897 = vmatpush2.msra.mxu0 0.0
    %898 = vmatprep.subr.mxu0 0.0
    %899 = vmatpush2.msra.mxu0 0.0
    %900 = vmatprep.subr.mxu0 0.0
    %901 = vmatpush2.msra.mxu0 0.0
    %902 = vmatprep.subr.mxu0 0.0
    %903 = vmatpush2.msra.mxu0 0.0
    %904 = vmatprep.subr.mxu0 0.0
    %905 = vmatpush2.msra.mxu0 0.0
    %906 = vmatprep.subr.mxu0 0.0
    %907 = vmatpush2.msra.mxu0 0.0
    %908 = vmatprep.mubr.f32.mxu0 0.0
    %909 = vmatmul.mubr.f32.gmra.mxu0 %v808
    %v910 = vpop.f32.mrf.mxu0
    %v911 = vadd.f32 %v774, %v910
    %v912 = vpop.f32.mrf.mxu0
    %913 = vmatprep.mubr.f32.mxu0 0.0
    %914 = vmatmul.mubr.f32.gmra.mxu0 %v810
    %v915 = vpop.f32.mrf.mxu0
    %v916 = vadd.f32 %v774, %v915
    %v917 = vpop.f32.mrf.mxu0
    %918 = vmatprep.mubr.f32.mxu0 0.0
    %919 = vmatmul.mubr.f32.gmra.mxu0 %v812
    %v920 = vpop.f32.mrf.mxu0
    %v921 = vadd.f32 %v774, %v920
    %v922 = vpop.f32.mrf.mxu0
    %923 = vmatprep.mubr.f32.mxu0 0.0
    %924 = vmatmul.mubr.f32.gmra.mxu0 %v814
    %v925 = vpop.f32.mrf.mxu0
    %v926 = vadd.f32 %v774, %v925
    %v927 = vpop.f32.mrf.mxu0
    %928 = vmatprep.mubr.f32.mxu0 0.0
    %929 = vmatmul.mubr.f32.gmra.mxu0 %v816
    %v930 = vpop.f32.mrf.mxu0
    %v931 = vadd.f32 %v774, %v930
    %v932 = vpop.f32.mrf.mxu0
    %933 = vmatprep.mubr.f32.mxu0 0.0
    %934 = vmatmul.mubr.f32.gmra.mxu0 %v818
    %v935 = vpop.f32.mrf.mxu0
    %v936 = vadd.f32 %v774, %v935
    %v937 = vpop.f32.mrf.mxu0
    %938 = vmatprep.mubr.f32.mxu0 0.0
    %939 = vmatmul.mubr.f32.gmra.mxu0 %v820
    %v940 = vpop.f32.mrf.mxu0
    %v941 = vadd.f32 %v774, %v940
    %v942 = vpop.f32.mrf.mxu0
    %943 = vmatprep.mubr.f32.mxu0 0.0
    %944 = vmatmul.mubr.f32.gmra.mxu0 %v822
    %v945 = vpop.f32.mrf.mxu0
    %v946 = vadd.f32 %v774, %v945
    %v947 = vpop.f32.mrf.mxu0
    %948 = vmatprep.mubr.f32.mxu0 0.0
    %949 = vmatmul.mubr.f32.gmra.mxu0 %v824
    %v950 = vpop.f32.mrf.mxu0
    %v951 = vadd.f32 %v774, %v950
    %v952 = vpop.f32.mrf.mxu0
    %953 = vmatprep.mubr.f32.mxu0 0.0
    %954 = vmatmul.mubr.f32.gmra.mxu0 %v826
    %v955 = vpop.f32.mrf.mxu0
    %v956 = vadd.f32 %v774, %v955
    %v957 = vpop.f32.mrf.mxu0
    %958 = vmatprep.mubr.f32.mxu0 0.0
    %959 = vmatmul.mubr.f32.gmra.mxu0 %v828
    %v960 = vpop.f32.mrf.mxu0
    %v961 = vadd.f32 %v774, %v960
    %v962 = vpop.f32.mrf.mxu0
    %963 = vmatprep.mubr.f32.mxu0 0.0
    %964 = vmatmul.mubr.f32.gmra.mxu0 %v830
    %v965 = vpop.f32.mrf.mxu0
    %v966 = vadd.f32 %v774, %v965
    %v967 = vpop.f32.mrf.mxu0
    %968 = vmatprep.mubr.f32.mxu0 0.0
    %969 = vmatmul.mubr.f32.gmra.mxu0 %v832
    %v970 = vpop.f32.mrf.mxu0
    %v971 = vadd.f32 %v774, %v970
    %v972 = vpop.f32.mrf.mxu0
    %973 = vmatprep.mubr.f32.mxu0 0.0
    %974 = vmatmul.mubr.f32.gmra.mxu0 %v834
    %v975 = vpop.f32.mrf.mxu0
    %v976 = vadd.f32 %v774, %v975
    %v977 = vpop.f32.mrf.mxu0
    %978 = vmatprep.mubr.f32.mxu0 0.0
    %979 = vmatmul.mubr.f32.gmra.mxu0 %v836
    %v980 = vpop.f32.mrf.mxu0
    %v981 = vadd.f32 %v774, %v980
    %v982 = vpop.f32.mrf.mxu0
    %983 = vmatprep.mubr.f32.mxu0 0.0
    %984 = vmatmul.mubr.f32.gmra.mxu0 %v838
    %v985 = vpop.f32.mrf.mxu0
    %v986 = vadd.f32 %v774, %v985
    %v987 = vpop.f32.mrf.mxu0
    %988 = vdwg.mxu0
    %v989 = vmax.f32 %v911, 0.0
    %v990 = vmax.f32 %v916, 0.0
    %v991 = vmax.f32 %v921, 0.0
    %v992 = vmax.f32 %v926, 0.0
    %v993 = vmax.f32 %v931, 0.0
    %v994 = vmax.f32 %v936, 0.0
    %v995 = vmax.f32 %v941, 0.0
    %v996 = vmax.f32 %v946, 0.0
    %v997 = vmax.f32 %v951, 0.0
    %v998 = vmax.f32 %v956, 0.0
    %v999 = vmax.f32 %v961, 0.0
    %v1000 = vmax.f32 %v966, 0.0
    %v1001 = vmax.f32 %v971, 0.0
    %v1002 = vmax.f32 %v976, 0.0
    %v1003 = vmax.f32 %v981, 0.0
    %v1004 = vmax.f32 %v986, 0.0
    %v1005 = vsel %vm598, %v989, -inf
    %v1006 = vsel %vm598, %v990, -inf
    %v1007 = vmax.f32 %v1005, %v1006
    %v1008 = vrot.slane %v1007, 4
    %v1009 = vmax.f32 %v1007, %v1008
    %v1010 = vrot.slane %v1009, 2
    %v1011 = vmax.f32 %v1009, %v1010
    %v1012 = vrot.slane %v1011, 1
    %v1013 = vmax.f32 %v1011, %v1012
    %v1014 = vsel %vm598, %v991, -inf
    %v1015 = vsel %vm598, %v992, -inf
    %v1016 = vmax.f32 %v1014, %v1015
    %v1017 = vrot.slane %v1016, 4
    %v1018 = vmax.f32 %v1016, %v1017
    %v1019 = vrot.slane %v1018, 2
    %v1020 = vmax.f32 %v1018, %v1019
    %v1021 = vrot.slane %v1020, 1
    %v1022 = vmax.f32 %v1020, %v1021
    %v1023 = vsel %vm598, %v993, -inf
    %v1024 = vsel %vm598, %v994, -inf
    %v1025 = vmax.f32 %v1023, %v1024
    %v1026 = vrot.slane %v1025, 4
    %v1027 = vmax.f32 %v1025, %v1026
    %v1028 = vrot.slane %v1027, 2
    %v1029 = vmax.f32 %v1027, %v1028
    %v1030 = vrot.slane %v1029, 1
    %v1031 = vmax.f32 %v1029, %v1030
    %v1032 = vsel %vm598, %v995, -inf
    %v1033 = vsel %vm598, %v996, -inf
    %v1034 = vmax.f32 %v1032, %v1033
    %v1035 = vrot.slane %v1034, 4
    %v1036 = vmax.f32 %v1034, %v1035
    %v1037 = vrot.slane %v1036, 2
    %v1038 = vmax.f32 %v1036, %v1037
    %v1039 = vrot.slane %v1038, 1
    %v1040 = vmax.f32 %v1038, %v1039
    %v1041 = vsel %vm598, %v997, -inf
    %v1042 = vsel %vm598, %v998, -inf
    %v1043 = vmax.f32 %v1041, %v1042
    %v1044 = vrot.slane %v1043, 4
    %v1045 = vmax.f32 %v1043, %v1044
    %v1046 = vrot.slane %v1045, 2
    %v1047 = vmax.f32 %v1045, %v1046
    %v1048 = vrot.slane %v1047, 1
    %v1049 = vmax.f32 %v1047, %v1048
    %v1050 = vsel %vm598, %v999, -inf
    %v1051 = vsel %vm598, %v1000, -inf
    %v1052 = vmax.f32 %v1050, %v1051
    %v1053 = vrot.slane %v1052, 4
    %v1054 = vmax.f32 %v1052, %v1053
    %v1055 = vrot.slane %v1054, 2
    %v1056 = vmax.f32 %v1054, %v1055
    %v1057 = vrot.slane %v1056, 1
    %v1058 = vmax.f32 %v1056, %v1057
    %v1059 = vsel %vm598, %v1001, -inf
    %v1060 = vsel %vm598, %v1002, -inf
    %v1061 = vmax.f32 %v1059, %v1060
    %v1062 = vrot.slane %v1061, 4
    %v1063 = vmax.f32 %v1061, %v1062
    %v1064 = vrot.slane %v1063, 2
    %v1065 = vmax.f32 %v1063, %v1064
    %v1066 = vrot.slane %v1065, 1
    %v1067 = vmax.f32 %v1065, %v1066
    %v1068 = vsel %vm598, %v1003, -inf
    %v1069 = vsel %vm598, %v1004, -inf
    %v1070 = vmax.f32 %v1068, %v1069
    %v1071 = vrot.slane %v1070, 4
    %v1072 = vmax.f32 %v1070, %v1071
    %v1073 = vrot.slane %v1072, 2
    %v1074 = vmax.f32 %v1072, %v1073
    %v1075 = vrot.slane %v1074, 1
    %v1076 = vmax.f32 %v1074, %v1075
    %v1085 = vsel %vm679, %v1022, %v1013
    %v1086 = vsel %vm681, %v1031, %v1085
    %v1087 = vsel %vm683, %v1040, %v1086
    %v1088 = vsel %vm685, %v1049, %v1087
    %v1089 = vsel %vm687, %v1058, %v1088
    %v1090 = vsel %vm689, %v1067, %v1089
    %v1091 = vsel %vm691, %v1076, %v1090
    %v1093 = vrot.slane %v29, 4
    %v1094 = vsel %vm155, %v695, %v1093
    %v1096 = vsel %vm598, %v1091, 0
    %1098 = vmatprep.subr.mxu0 0.0
    %1099 = vmatpush1.msra.mxu0 0.0
    %1100 = vmatprep.subr.mxu0 0.0
    %1101 = vmatpush1.msra.mxu0 0.0
    %1102 = vmatprep.subr.mxu0 0.0
    %1103 = vmatpush1.msra.mxu0 0.0
    %1104 = vmatprep.subr.mxu0 0.0
    %1105 = vmatpush1.msra.mxu0 0.0
    %1106 = vmatprep.subr.mxu0 0.0
    %1107 = vmatpush1.msra.mxu0 0.0
    %1108 = vmatprep.subr.mxu0 0.0
    %1109 = vmatpush1.msra.mxu0 0.0
    %1110 = vmatprep.subr.mxu0 0.0
    %1111 = vmatpush1.msra.mxu0 0.0
    %1112 = vmatprep.subr.mxu0 0.0
    %1113 = vmatpush1.msra.mxu0 0.0
    %1114 = vmatprep.subr.mxu0 0.0
    %1115 = vmatpush1.msra.mxu0 0.0
    %1116 = vmatprep.subr.mxu0 0.0
    %1117 = vmatpush1.msra.mxu0 0.0
    %1118 = vmatprep.subr.mxu0 0.0
    %1119 = vmatpush1.msra.mxu0 0.0
    %1120 = vmatprep.subr.mxu0 0.0
    %1121 = vmatpush1.msra.mxu0 0.0
    %1122 = vmatprep.subr.mxu0 0.0
    %1123 = vmatpush1.msra.mxu0 0.0
    %1124 = vmatprep.subr.mxu0 0.0
    %1125 = vmatpush1.msra.mxu0 0.0
    %1126 = vmatprep.subr.mxu0 0.0
    %1127 = vmatpush1.msra.mxu0 0.0
    %1128 = vmatprep.subr.mxu0 0.0
    %1129 = vmatpush1.msra.mxu0 %v1094
    %1130 = vmatprep.subr.mxu0 0.0
    %1131 = vmatpush2.msra.mxu0 0.0
    %1132 = vmatprep.subr.mxu0 0.0
    %1133 = vmatpush2.msra.mxu0 0.0
    %1134 = vmatprep.subr.mxu0 0.0
    %1135 = vmatpush2.msra.mxu0 0.0
    %1136 = vmatprep.subr.mxu0 0.0
    %1137 = vmatpush2.msra.mxu0 0.0
    %1138 = vmatprep.subr.mxu0 0.0
    %1139 = vmatpush2.msra.mxu0 0.0
    %1140 = vmatprep.subr.mxu0 0.0
    %1141 = vmatpush2.msra.mxu0 0.0
    %1142 = vmatprep.subr.mxu0 0.0
    %1143 = vmatpush2.msra.mxu0 0.0
    %1144 = vmatprep.subr.mxu0 0.0
    %1145 = vmatpush2.msra.mxu0 0.0
    %1146 = vmatprep.subr.mxu0 0.0
    %1147 = vmatpush2.msra.mxu0 0.0
    %1148 = vmatprep.subr.mxu0 0.0
    %1149 = vmatpush2.msra.mxu0 0.0
    %1150 = vmatprep.subr.mxu0 0.0
    %1151 = vmatpush2.msra.mxu0 0.0
    %1152 = vmatprep.subr.mxu0 0.0
    %1153 = vmatpush2.msra.mxu0 0.0
    %1154 = vmatprep.subr.mxu0 0.0
    %1155 = vmatpush2.msra.mxu0 0.0
    %1156 = vmatprep.subr.mxu0 0.0
    %1157 = vmatpush2.msra.mxu0 0.0
    %1158 = vmatprep.subr.mxu0 0.0
    %1159 = vmatpush2.msra.mxu0 0.0
    %1160 = vmatprep.subr.mxu0 0.0
    %1161 = vmatpush2.msra.mxu0 0.0
    %1162 = vmatprep.mubr.f32.mxu0 0.0
    %1163 = vmatmul.mubr.f32.gmra.mxu0 %v1096
    %v1164 = vpop.f32.mrf.mxu0
    %v1165 = vadd.f32 0.0, %v1164
    %v1166 = vpop.f32.mrf.mxu0
    %1167 = vdwg.mxu0
    %v1168 = vadd.f32 %v770, %v1165
    %v1169 = vlaneseq
    %v1170 = vshrl.u32 %v1169, 7
    %v1171 = vsub.s32 0, %v1170
    %v1172 = vrot.slane %v30, %v1171
    %v1173 = vadd.f32 %v1168, %v1172
    %v1175 = vrot.slane %v1173, 2
    %1176 = vrot.lane.b32.xlu0 %v1175, 32
    %v1177 = vpop.permute.xlu0 %1176
    %v1179 = vrot.slane %v1173, 4
    %1180 = vrot.lane.b32.xlu0 %v1179, 64
    %v1181 = vpop.permute.xlu0 %1180
    %v1183 = vrot.slane %v1173, 6
    %1184 = vrot.lane.b32.xlu0 %v1183, 96
    %v1185 = vpop.permute.xlu0 %1184
    %vm1187 = vcmask 261120
    %v1188 = vsel %vm1187, %v1173, %v1177
    %vm1189 = vcmask 523264
    %v1190 = vsel %vm1189, %v1188, %v1181
    %vm1191 = vcmask 785408
    %v1192 = vsel %vm1191, %v1190, %v1185
    %1193 = vst [vmem:[#allocation2] sm:$0x3] %v1192
    // Predicated region
    $region18: #{tpu_custom_call.1} parent=1 // pred_check
      _
    $region19: #{tpu_custom_call.1} parent=1 // pred_check_branch
      %1195 = sbr.rel (0) target = $region21
    $region20: #{tpu_custom_call.1} parent=1 // pred_region
      %s1197 = ssub.s32 32, 32
      %1198 = vsyncadd [#allocation3], %s1197
      %s1200 = sshll.u32 [#allocation2], 4
      %s1201 = int_to_ptr.vmem [resolvable:$true] %s1200
      %1203 = dma.vmem_to_hbm [thread:$0]  %s1201, 32, %s4, [#allocation3]
    $region21: #{tpu_custom_call.1} parent=1 // pred_fallthru
      _
    // Predicated region
    $region22: #{tpu_custom_call.1} parent=1 // pred_check
      _
    $region23: #{tpu_custom_call.1} parent=1 // pred_check_branch
      %1205 = sbr.rel (0) target = $region25
    $region24: #{tpu_custom_call.1} parent=1 // pred_region
      %1206 = dma.done [#allocation3], 32
    $region25: #{tpu_custom_call.1} parent=1 // pred_fallthru
      _
    %1207 = vsyncpa [#allocation3], 1

</llo_original>
